<compile_context>
chip_gen: v7x
topology: tpu7x:2x2x1
jax: 0.10.0
libtpu: 0.0.40
codegen_flags: <defaults>
</compile_context>

<pallas_src>
import functools
import math

import numpy as np
import jax
import jax.numpy as jnp
from jax.experimental import pallas as pl
from jax.experimental.pallas import tpu as pltpu

EMBED_SIZE = 300          # module hard-codes 300
NEG_SAMPLES = 5
EXAMPLE_SIZE = NEG_SAMPLES + 1   # 1 gold + 5 negatives
DROPOUT_P = 0.7


# ----------------------------------------------------------------------------
# Fused Pallas kernel: one grid step == one aspect.
#   x_ref  : (1, B, D)     input embeddings (after dropout-mask application)
#   t_ref  : (1, B, E, D)  gold+negative target embeddings (gold at e == 0)
#   ux_ref : (1, B, D)     uniform(0,1) randoms for input dropout
#   ut_ref : (1, B, E, D)  uniform(0,1) randoms for target dropout
#   o_ref  : (1, 1, 1)     per-aspect mean cross-entropy loss
# ----------------------------------------------------------------------------
def _fused_loss_kernel(x_ref, t_ref, ux_ref, ut_ref, o_ref, *, drop_p):
    B = x_ref.shape[1]
    x = x_ref[0]          # (B, D)
    t = t_ref[0]          # (B, E, D)

    if drop_p > 0.0:
        # 0/1 keep masks only; the 1/keep^2 scale is folded into the (B, E)
        # scores below (mathematically identical, removes two full-tensor muls).
        x = x * (ux_ref[0] >= drop_p).astype(jnp.float32)
        t = t * (ut_ref[0] >= drop_p).astype(jnp.float32)
        scale = 1.0 / ((1.0 - drop_p) * (1.0 - drop_p))
    else:
        scale = 1.0

    # sim[b, e] = <target[b, e], input[b]>   (feature axis = lane axis)
    scores = jnp.sum(t * x[:, None, :], axis=-1) * scale              # (B, E)

    # CrossEntropyLoss(reduction='mean') with target class 0 (gold in col 0).
    m = jnp.max(scores, axis=-1, keepdims=True)                       # (B, 1)
    lse = m + jnp.log(jnp.sum(jnp.exp(scores - m), axis=-1, keepdims=True))
    per_example = lse - scores[:, 0:1]                                # (B, 1)
    loss = jnp.sum(per_example) * (1.0 / float(B))
    o_ref[...] = jnp.reshape(loss, (1, 1, 1))


def fused_aspect_losses(input_emb, target_emb, u_in, u_tgt, drop_p):
    """All aspects in ONE pallas_call.  Returns (A,) per-aspect losses."""
    A, B, D = input_emb.shape
    E = target_emb.shape[2]
    kernel = functools.partial(_fused_loss_kernel, drop_p=float(drop_p))
    out = pl.pallas_call(
        kernel,
        out_shape=jax.ShapeDtypeStruct((A, 1, 1), jnp.float32),
        grid=(A,),
        in_specs=[
            pl.BlockSpec((1, B, D), lambda a: (a, 0, 0)),
            pl.BlockSpec((1, B, E, D), lambda a: (a, 0, 0, 0)),
            pl.BlockSpec((1, B, D), lambda a: (a, 0, 0)),
            pl.BlockSpec((1, B, E, D), lambda a: (a, 0, 0, 0)),
        ],
        out_specs=pl.BlockSpec((1, 1, 1), lambda a: (a, 0, 0)),
        compiler_params=pltpu.CompilerParams(
            dimension_semantics=("parallel",)),   # v7x: shard aspects across TCs
    )(input_emb, target_emb, u_in, u_tgt)
    # TODO(synk): for large B, add a second grid axis over B tiles (accumulator
    # scratch + pl.when init/finalize) to stay within per-generation VMEM limits.
    return out[:, 0, 0]


# ----------------------------------------------------------------------------
# JAX re-implementation of the Embedder module (glue + parameter init)
# ----------------------------------------------------------------------------
class EmbedderJAX:
    def __init__(self, doc_count, bigram_count, trigram_count, subframe_count):
        self.embedding_size = EMBED_SIZE
        scale = 1.0 / math.sqrt(self.embedding_size)
        rng = np.random.RandomState(1)   # deterministic init, mirrors the module
        self.bigram_embeddings = jnp.asarray(
            rng.normal(scale=scale, size=(bigram_count, EMBED_SIZE)), jnp.float32)
        self.trigram_embeddings = jnp.asarray(
            rng.normal(scale=scale, size=(trigram_count, EMBED_SIZE)), jnp.float32)
        self.subframe_embeddings = jnp.asarray(
            rng.normal(scale=scale, size=(subframe_count, EMBED_SIZE)), jnp.float32)
        # TODO(synk): the BLSTM document encoder is an external module not given
        # here; it is replaced by a deterministic per-document embedding table
        # with the same output size (EMBED_SIZE).
        self.doc_embeddings = jnp.asarray(
            rng.normal(scale=scale, size=(doc_count, EMBED_SIZE)), jnp.float32)
        self.aspects = ['text2bigram', 'text2trigram',
                        'bigram2subframe', 'trigram2subframe']

    def forward(self, batch, key=None, training=True):
        # batch indices are already 0-based (local to their tables), so the
        # `- *_start` offsets of the original module are implicit.
        batch_input_index, batch_gold_index, batch_negs_index, text_nodes = batch
        if key is None:
            key = jax.random.PRNGKey(0)

        textid2index = {int(t): i for i, t in enumerate(text_nodes)}
        output_doc_embeddings = self.doc_embeddings[
            jnp.asarray([int(t) for t in text_nodes], jnp.int32)]  # BLSTM stand-in

        present = []   # list of (aspect_name, input_emb (B,D), target_emb (B,E,D))
        for aspect in self.aspects:
            if len(batch_gold_index[aspect]) == 0:
                continue

            if aspect == 'text2bigram':
                target_table = self.bigram_embeddings
                idx = jnp.asarray([textid2index[int(i)]
                                   for i in batch_input_index[aspect]], jnp.int32)
                input_emb = output_doc_embeddings[idx]
            elif aspect == 'text2trigram':
                target_table = self.trigram_embeddings
                idx = jnp.asarray([textid2index[int(i)]
                                   for i in batch_input_index[aspect]], jnp.int32)
                input_emb = output_doc_embeddings[idx]
            elif aspect == 'bigram2subframe':
                target_table = self.subframe_embeddings
                input_emb = jnp.take(
                    self.bigram_embeddings,
                    jnp.asarray(batch_input_index[aspect], jnp.int32), axis=0)
            else:  # 'trigram2subframe'
                target_table = self.subframe_embeddings
                input_emb = jnp.take(
                    self.trigram_embeddings,
                    jnp.asarray(batch_input_index[aspect], jnp.int32), axis=0)

            tgt_idx = jnp.concatenate(
                [jnp.asarray(batch_gold_index[aspect], jnp.int32),
                 jnp.asarray(batch_negs_index[aspect], jnp.int32)], axis=1)  # (B, 6)
            target_emb = jnp.take(target_table, tgt_idx, axis=0)             # (B, 6, D)
            present.append((aspect, input_emb.astype(jnp.float32),
                            target_emb.astype(jnp.float32)))

        if not present:
            return jnp.float32(0.0), {}

        # TODO(synk): aspects with differing batch sizes would need pad+mask;
        # here all present aspects share the same B, so stack directly.
        x = jnp.stack([p[1] for p in present])      # (A, B, D)
        t = jnp.stack([p[2] for p in present])      # (A, B, E, D)

        drop_p = DROPOUT_P if training else 0.0
        kx, kt = jax.random.split(key)
        u_x = jax.random.uniform(kx, x.shape, jnp.float32)
        u_t = jax.random.uniform(kt, t.shape, jnp.float32)

        losses = fused_aspect_losses(x, t, u_x, u_t, drop_p)   # (A,)

        loss_all = {p[0]: losses[i] for i, p in enumerate(present)}
        rate = 1.0
        loss = jnp.sum(losses) * rate
        return loss, loss_all


# ----------------------------------------------------------------------------
if __name__ == "__main__":
    DOC_COUNT, BIGRAM_COUNT, TRIGRAM_COUNT, SUBFRAME_COUNT = 16, 64, 64, 32
    B = 8  # examples per aspect

    embedder = EmbedderJAX(DOC_COUNT, BIGRAM_COUNT, TRIGRAM_COUNT, SUBFRAME_COUNT)

    key = jax.random.PRNGKey(0)
    keys = jax.random.split(key, 16)
    text_nodes = list(range(DOC_COUNT))

    def rnd_idx(k, hi, shape):
        return np.asarray(jax.random.randint(k, shape, 0, hi), dtype=np.int32)

    batch_input_index = {
        'text2bigram':      rnd_idx(keys[0], DOC_COUNT, (B,)),
        'text2trigram':     rnd_idx(keys[1], DOC_COUNT, (B,)),
        'bigram2subframe':  rnd_idx(keys[2], BIGRAM_COUNT, (B,)),
        'trigram2subframe': rnd_idx(keys[3], TRIGRAM_COUNT, (B,)),
    }
    batch_gold_index = {
        'text2bigram':      rnd_idx(keys[4], BIGRAM_COUNT, (B, 1)),
        'text2trigram':     rnd_idx(keys[5], TRIGRAM_COUNT, (B, 1)),
        'bigram2subframe':  rnd_idx(keys[6], SUBFRAME_COUNT, (B, 1)),
        'trigram2subframe': rnd_idx(keys[7], SUBFRAME_COUNT, (B, 1)),
    }
    batch_negs_index = {
        'text2bigram':      rnd_idx(keys[8], BIGRAM_COUNT, (B, NEG_SAMPLES)),
        'text2trigram':     rnd_idx(keys[9], TRIGRAM_COUNT, (B, NEG_SAMPLES)),
        'bigram2subframe':  rnd_idx(keys[10], SUBFRAME_COUNT, (B, NEG_SAMPLES)),
        'trigram2subframe': rnd_idx(keys[11], SUBFRAME_COUNT, (B, NEG_SAMPLES)),
    }

    batch = (batch_input_index, batch_gold_index, batch_negs_index, text_nodes)

    loss, loss_all = embedder.forward(batch, key=keys[12], training=True)
    loss = jax.block_until_ready(loss)
    for v in loss_all.values():
        jax.block_until_ready(v)

    assert np.isfinite(float(loss)), "loss is not finite"
    print("KERNEL_OK")
</pallas_src>

<mosaic_0001>
module attributes {stable_mosaic.version = 11 : i64} {
  func.func @_fused_loss_kernel(%arg0: i32, %arg1: memref<1x8x300xf32, #tpu.memory_space<vmem>>, %arg2: memref<1x8x6x300xf32, #tpu.memory_space<vmem>>, %arg3: memref<1x8x300xf32, #tpu.memory_space<vmem>>, %arg4: memref<1x8x6x300xf32, #tpu.memory_space<vmem>>, %arg5: memref<1x1x1xf32, #tpu.memory_space<vmem>>) attributes {dimension_semantics = [#tpu.dimension_semantics<parallel>], iteration_bounds = array<i64: 4>, scalar_prefetch = 0 : i64, scratch_operands = 0 : i64, tpu.core_type = #tpu.core_type<tc>, window_params = [{transform_indices = @transform_0, window_bounds = array<i64: 1, 8, 300>}, {transform_indices = @transform_1, window_bounds = array<i64: 1, 8, 6, 300>}, {transform_indices = @transform_2, window_bounds = array<i64: 1, 8, 300>}, {transform_indices = @transform_3, window_bounds = array<i64: 1, 8, 6, 300>}, {transform_indices = @transform_4, window_bounds = array<i64: 1, 1, 1>}]} {
    %c0 = arith.constant 0 : index
    %c0_0 = arith.constant 0 : index
    %c0_1 = arith.constant 0 : index
    %0 = vector.load %arg1[%c0, %c0_0, %c0_1] : memref<1x8x300xf32, #tpu.memory_space<vmem>>, vector<1x8x300xf32>
    %1 = vector.shape_cast %0 : vector<1x8x300xf32> to vector<8x300xf32>
    %c0_2 = arith.constant 0 : index
    %c0_3 = arith.constant 0 : index
    %c0_4 = arith.constant 0 : index
    %c0_5 = arith.constant 0 : index
    %2 = vector.load %arg2[%c0_2, %c0_3, %c0_4, %c0_5] : memref<1x8x6x300xf32, #tpu.memory_space<vmem>>, vector<1x8x6x300xf32>
    %3 = vector.shape_cast %2 : vector<1x8x6x300xf32> to vector<8x6x300xf32>
    %c0_6 = arith.constant 0 : index
    %c0_7 = arith.constant 0 : index
    %c0_8 = arith.constant 0 : index
    %4 = vector.load %arg3[%c0_6, %c0_7, %c0_8] : memref<1x8x300xf32, #tpu.memory_space<vmem>>, vector<1x8x300xf32>
    %5 = vector.shape_cast %4 : vector<1x8x300xf32> to vector<8x300xf32>
    %cst = arith.constant 0.699999988 : f32
    %6 = vector.broadcast %cst : f32 to vector<8x300xf32>
    %7 = arith.cmpf oge, %5, %6 : vector<8x300xf32>
    %8 = arith.extui %7 : vector<8x300xi1> to vector<8x300xi32>
    %9 = arith.sitofp %8 : vector<8x300xi32> to vector<8x300xf32>
    %10 = arith.mulf %1, %9 : vector<8x300xf32>
    %c0_9 = arith.constant 0 : index
    %c0_10 = arith.constant 0 : index
    %c0_11 = arith.constant 0 : index
    %c0_12 = arith.constant 0 : index
    %11 = vector.load %arg4[%c0_9, %c0_10, %c0_11, %c0_12] : memref<1x8x6x300xf32, #tpu.memory_space<vmem>>, vector<1x8x6x300xf32>
    %12 = vector.shape_cast %11 : vector<1x8x6x300xf32> to vector<8x6x300xf32>
    %cst_13 = arith.constant 0.699999988 : f32
    %13 = vector.broadcast %cst_13 : f32 to vector<8x6x300xf32>
    %14 = arith.cmpf oge, %12, %13 : vector<8x6x300xf32>
    %15 = arith.extui %14 : vector<8x6x300xi1> to vector<8x6x300xi32>
    %16 = arith.sitofp %15 : vector<8x6x300xi32> to vector<8x6x300xf32>
    %17 = arith.mulf %3, %16 : vector<8x6x300xf32>
    %18 = vector.shape_cast %10 : vector<8x300xf32> to vector<8x1x300xf32>
    %19 = vector.broadcast %18 : vector<8x1x300xf32> to vector<8x6x300xf32>
    %20 = arith.mulf %17, %19 : vector<8x6x300xf32>
    %cst_14 = arith.constant dense<0.000000e+00> : vector<8x6xf32>
    %21 = vector.multi_reduction <add>, %20, %cst_14 [2] : vector<8x6x300xf32> to vector<8x6xf32>
    %cst_15 = arith.constant 11.1111107 : f32
    %22 = vector.broadcast %cst_15 : f32 to vector<8x6xf32>
    %23 = arith.mulf %21, %22 : vector<8x6xf32>
    %cst_16 = arith.constant dense<0xFF800000> : vector<8xf32>
    %24 = vector.multi_reduction <maximumf>, %23, %cst_16 [1] : vector<8x6xf32> to vector<8xf32>
    %25 = vector.shape_cast %24 : vector<8xf32> to vector<8x1xf32>
    %26 = vector.broadcast %25 : vector<8x1xf32> to vector<8x6xf32>
    %27 = arith.subf %23, %26 : vector<8x6xf32>
    %28 = math.exp %27 : vector<8x6xf32>
    %cst_17 = arith.constant dense<0.000000e+00> : vector<8xf32>
    %29 = vector.multi_reduction <add>, %28, %cst_17 [1] : vector<8x6xf32> to vector<8xf32>
    %30 = vector.shape_cast %29 : vector<8xf32> to vector<8x1xf32>
    %31 = math.log %30 : vector<8x1xf32>
    %32 = arith.addf %25, %31 : vector<8x1xf32>
    %33 = vector.extract_strided_slice %23 {offsets = [0, 0], sizes = [8, 1], strides = [1, 1]} : vector<8x6xf32> to vector<8x1xf32>
    %34 = arith.subf %32, %33 : vector<8x1xf32>
    %35 = vector.shape_cast %34 : vector<8x1xf32> to vector<1x8x1xf32>
    %cst_18 = arith.constant dense<0.000000e+00> : vector<1xf32>
    %36 = vector.multi_reduction <add>, %35, %cst_18 [1, 2] : vector<1x8x1xf32> to vector<1xf32>
    %37 = vector.shape_cast %36 : vector<1xf32> to vector<1x1x1xf32>
    %38 = vector.extract %37[0, 0, 0] : f32 from vector<1x1x1xf32>
    %cst_19 = arith.constant 1.250000e-01 : f32
    %39 = arith.mulf %38, %cst_19 : f32
    %40 = vector.broadcast %39 : f32 to vector<1x1x1xf32>
    %c0_20 = arith.constant 0 : index
    %c0_21 = arith.constant 0 : index
    %c0_22 = arith.constant 0 : index
    %41 = vector.load %arg5[%c0_20, %c0_21, %c0_22] : memref<1x1x1xf32, #tpu.memory_space<vmem>>, vector<1x1x1xf32>
    tpu.vector_store %arg5[%c0_20, %c0_21, %c0_22], %40 {strides = array<i32>} : memref<1x1x1xf32, #tpu.memory_space<vmem>>, vector<1x1x1xf32>,
    return
  }
  func.func @transform_0(%arg0: i32) -> (i32, i32, i32) {
    %c0_i32 = arith.constant 0 : i32
    %c0_i32_0 = arith.constant 0 : i32
    %c0_i32_1 = arith.constant 0 : i32
    return %arg0, %c0_i32, %c0_i32_0 : i32, i32, i32
  }
  func.func @transform_1(%arg0: i32) -> (i32, i32, i32, i32) {
    %c0_i32 = arith.constant 0 : i32
    %c0_i32_0 = arith.constant 0 : i32
    %c0_i32_1 = arith.constant 0 : i32
    %c0_i32_2 = arith.constant 0 : i32
    return %arg0, %c0_i32, %c0_i32_0, %c0_i32_1 : i32, i32, i32, i32
  }
  func.func @transform_2(%arg0: i32) -> (i32, i32, i32) {
    %c0_i32 = arith.constant 0 : i32
    %c0_i32_0 = arith.constant 0 : i32
    %c0_i32_1 = arith.constant 0 : i32
    return %arg0, %c0_i32, %c0_i32_0 : i32, i32, i32
  }
  func.func @transform_3(%arg0: i32) -> (i32, i32, i32, i32) {
    %c0_i32 = arith.constant 0 : i32
    %c0_i32_0 = arith.constant 0 : i32
    %c0_i32_1 = arith.constant 0 : i32
    %c0_i32_2 = arith.constant 0 : i32
    return %arg0, %c0_i32, %c0_i32_0, %c0_i32_1 : i32, i32, i32, i32
  }
  func.func @transform_4(%arg0: i32) -> (i32, i32, i32) {
    %c0_i32 = arith.constant 0 : i32
    %c0_i32_0 = arith.constant 0 : i32
    %c0_i32_1 = arith.constant 0 : i32
    return %arg0, %c0_i32, %c0_i32_0 : i32, i32, i32
  }
}

</mosaic_0001>

<llo_original>
// kernel: tpu_custom_call.1
$region0: #{tpu_custom_call.1}
  #allocation0 [shape = 'u32[]', space=smem, size = 0x4, offset = 0x4, fixed_abs, tag = 'smem constant byte address 0x4 - core index']
  #allocation1 [shape = 'u32[144,128]{1,0:T(1,128)}', space=vmem, size = 0x12000, scoped, tag = 'internal scratch']
  %s0 = inlined_call_operand.vmem [shape: f32[4,8,300], index: 0, kind: input, shape index: {}]
  %s1 = inlined_call_operand.vmem [shape: f32[4,8,6,300], index: 1, kind: input, shape index: {}]
  %s2 = inlined_call_operand.vmem [shape: f32[4,8,300], index: 2, kind: input, shape index: {}]
  %s3 = inlined_call_operand.vmem [shape: f32[4,8,6,300], index: 3, kind: input, shape index: {}]
  %s4 = inlined_call_operand.vmem [shape: f32[4,1,1], index: 4, kind: output, shape index: {}]
  %s5 = sld [smem:[#allocation0]]
  $region49: #{tpu_custom_call.1} parent=0
    _
  %s7 = ssub.s32 1, %s5
  %s8 = scalar_select 0, %s7, %s5
  loop: start=0, step=1, limit=6
  $region2: #{tpu_custom_call.1} parent=0 // loop_pre_header
    _
  $region3: #{tpu_custom_call.1} parent=0 // loop_header
    %s10 = sphi 0, %s14
    %p11 = scmp.ge.s32.totalorder %s10, 6
    %s20 = sphi 0, %s22
    %s23 = sphi 0, %s20
    %s24 = sphi 0, %s23
    %s40 = sphi 0, %s24
    %s46 = sphi 0, %s48
    %s49 = sphi 0, %s46
    %s50 = sphi 0, %s49
    %s66 = sphi 0, %s50
    %s72 = sphi 0, %s74
    %s75 = sphi 0, %s72
    %s76 = sphi 0, %s75
    %s92 = sphi 0, %s76
    %s98 = sphi 0, %s100
    %s101 = sphi 0, %s98
    %s102 = sphi 0, %s101
    %s118 = sphi 0, %s102
    %s124 = sphi 0, %s126
    %s127 = sphi 0, %s124
    %s128 = sphi 0, %s127
    %s144 = sphi 0, %s128
  $region4: #{tpu_custom_call.1} parent=0 // loop_header_branch
    %13 = sbr.rel (%p11) target = $region8
  $region5: #{tpu_custom_call.1} parent=0 // loop_body
    %s15 = ssub.s32 %s10, 1
    %s16 = ssub.s32 %s10, 2
    %s17 = sadd.s32 %s10, 1
    %s18 = ssub.s32 %s10, %s17
    %p19 = scmp.eq.s32.totalorder %s18, 0
    %s21 = sadd.s32 %s20, 1
    %s22 = scalar_select %p19, %s20, %s21
    %p25 = pneg %p19
    %p26 = scmp.eq.s32.totalorder %s10, 3
    %p27 = por %p25, %p26
    %p28 = scmp.ne.s32.totalorder %s20, %s23
    %p29 = scmp.eq.s32.totalorder %s10, 0
    %p30 = por %p28, %p29
    %p31 = scmp.ne.s32.totalorder %s20, %s23
    %p32 = scmp.eq.s32.totalorder %s15, 3
    %p33 = por %p31, %p32
    %p34 = scmp.ne.s32.totalorder %s23, %s24
    %p35 = scmp.eq.s32.totalorder %s15, 0
    %p36 = por %p34, %p35
    %p37 = scmp.ne.s32.totalorder %s23, %s24
    %p38 = scmp.eq.s32.totalorder %s16, 3
    %p39 = por %p37, %p38
    %p41 = scmp.ne.s32.totalorder %s24, %s40
    %p42 = scmp.eq.s32.totalorder %s16, 0
    %p43 = por %p41, %p42
    %s44 = ssub.s32 %s10, %s17
    %p45 = scmp.eq.s32.totalorder %s44, 0
    %s47 = sadd.s32 %s46, 1
    %s48 = scalar_select %p45, %s46, %s47
    %p51 = pneg %p45
    %p52 = scmp.eq.s32.totalorder %s10, 3
    %p53 = por %p51, %p52
    %p54 = scmp.ne.s32.totalorder %s46, %s49
    %p55 = scmp.eq.s32.totalorder %s10, 0
    %p56 = por %p54, %p55
    %p57 = scmp.ne.s32.totalorder %s46, %s49
    %p58 = scmp.eq.s32.totalorder %s15, 3
    %p59 = por %p57, %p58
    %p60 = scmp.ne.s32.totalorder %s49, %s50
    %p61 = scmp.eq.s32.totalorder %s15, 0
    %p62 = por %p60, %p61
    %p63 = scmp.ne.s32.totalorder %s49, %s50
    %p64 = scmp.eq.s32.totalorder %s16, 3
    %p65 = por %p63, %p64
    %p67 = scmp.ne.s32.totalorder %s50, %s66
    %p68 = scmp.eq.s32.totalorder %s16, 0
    %p69 = por %p67, %p68
    %s70 = ssub.s32 %s10, %s17
    %p71 = scmp.eq.s32.totalorder %s70, 0
    %s73 = sadd.s32 %s72, 1
    %s74 = scalar_select %p71, %s72, %s73
    %p77 = pneg %p71
    %p78 = scmp.eq.s32.totalorder %s10, 3
    %p79 = por %p77, %p78
    %p80 = scmp.ne.s32.totalorder %s72, %s75
    %p81 = scmp.eq.s32.totalorder %s10, 0
    %p82 = por %p80, %p81
    %p83 = scmp.ne.s32.totalorder %s72, %s75
    %p84 = scmp.eq.s32.totalorder %s15, 3
    %p85 = por %p83, %p84
    %p86 = scmp.ne.s32.totalorder %s75, %s76
    %p87 = scmp.eq.s32.totalorder %s15, 0
    %p88 = por %p86, %p87
    %p89 = scmp.ne.s32.totalorder %s75, %s76
    %p90 = scmp.eq.s32.totalorder %s16, 3
    %p91 = por %p89, %p90
    %p93 = scmp.ne.s32.totalorder %s76, %s92
    %p94 = scmp.eq.s32.totalorder %s16, 0
    %p95 = por %p93, %p94
    %s96 = ssub.s32 %s10, %s17
    %p97 = scmp.eq.s32.totalorder %s96, 0
    %s99 = sadd.s32 %s98, 1
    %s100 = scalar_select %p97, %s98, %s99
    %p103 = pneg %p97
    %p104 = scmp.eq.s32.totalorder %s10, 3
    %p105 = por %p103, %p104
    %p106 = scmp.ne.s32.totalorder %s98, %s101
    %p107 = scmp.eq.s32.totalorder %s10, 0
    %p108 = por %p106, %p107
    %p109 = scmp.ne.s32.totalorder %s98, %s101
    %p110 = scmp.eq.s32.totalorder %s15, 3
    %p111 = por %p109, %p110
    %p112 = scmp.ne.s32.totalorder %s101, %s102
    %p113 = scmp.eq.s32.totalorder %s15, 0
    %p114 = por %p112, %p113
    %p115 = scmp.ne.s32.totalorder %s101, %s102
    %p116 = scmp.eq.s32.totalorder %s16, 3
    %p117 = por %p115, %p116
    %p119 = scmp.ne.s32.totalorder %s102, %s118
    %p120 = scmp.eq.s32.totalorder %s16, 0
    %p121 = por %p119, %p120
    %s122 = ssub.s32 %s10, %s17
    %p123 = scmp.eq.s32.totalorder %s122, 0
    %s125 = sadd.s32 %s124, 1
    %s126 = scalar_select %p123, %s124, %s125
    %p129 = pneg %p123
    %p130 = scmp.eq.s32.totalorder %s10, 3
    %p131 = por %p129, %p130
    %p132 = scmp.ne.s32.totalorder %s124, %s127
    %p133 = scmp.eq.s32.totalorder %s10, 0
    %p134 = por %p132, %p133
    %p135 = scmp.ne.s32.totalorder %s124, %s127
    %p136 = scmp.eq.s32.totalorder %s15, 3
    %p137 = por %p135, %p136
    %p138 = scmp.ne.s32.totalorder %s127, %s128
    %p139 = scmp.eq.s32.totalorder %s15, 0
    %p140 = por %p138, %p139
    %p141 = scmp.ne.s32.totalorder %s127, %s128
    %p142 = scmp.eq.s32.totalorder %s16, 3
    %p143 = por %p141, %p142
    %p145 = scmp.ne.s32.totalorder %s128, %s144
    %p146 = scmp.eq.s32.totalorder %s16, 0
    %p147 = por %p145, %p146
    %p148 = scmp.le.s32.totalorder 1, %s10
    %p149 = scmp.lt.s32.totalorder %s10, 5
    %p150 = pnand %p148, %p149
    %p151 = pneg %p150
    // Predicated region
    $region9: #{tpu_custom_call.1} parent=5 // pred_check
      _
    $region10: #{tpu_custom_call.1} parent=5 // pred_check_branch
      %153 = sbr.rel (%p150) target = $region12
    $region11: #{tpu_custom_call.1} parent=5 // pred_region
      %s154 = ssub.s32 %s10, 1
    $region12: #{tpu_custom_call.1} parent=5 // pred_fallthru
      _
    %p155 = scmp.lt.s32.totalorder %s10, 4
    // Predicated region
    $region13: #{tpu_custom_call.1} parent=5 // pred_check
      %p156 = pneg %p155
    $region14: #{tpu_custom_call.1} parent=5 // pred_check_branch
      %158 = sbr.rel (%p156) target = $region16
    $region15: #{tpu_custom_call.1} parent=5 // pred_region
      // Predicated region
      $region17: #{tpu_custom_call.1} parent=15 // pred_check
        %p159 = pneg %p30
      $region18: #{tpu_custom_call.1} parent=15 // pred_check_branch
        %161 = sbr.rel (%p159) target = $region20
      $region19: #{tpu_custom_call.1} parent=15 // pred_region
        %p162 = scmp.lt.s32.totalorder %s10, 3
        %s163 = scalar_select %p162, %s10, 3
        %s164 = smul.addr %s163, 3
        %s165 = smul.addr %s164, 8
        %s166 = scalar_lea.vmem %s0, %s165
      $region20: #{tpu_custom_call.1} parent=15 // pred_fallthru
        _
      // Predicated region
      $region21: #{tpu_custom_call.1} parent=15 // pred_check
        %p167 = pneg %p56
      $region22: #{tpu_custom_call.1} parent=15 // pred_check_branch
        %169 = sbr.rel (%p167) target = $region24
      $region23: #{tpu_custom_call.1} parent=15 // pred_region
        %p170 = scmp.lt.s32.totalorder %s10, 3
        %s171 = scalar_select %p170, %s10, 3
        %s172 = smul.addr %s171, 24
        %s173 = smul.addr %s172, 8
        %s174 = scalar_lea.vmem %s1, %s173
      $region24: #{tpu_custom_call.1} parent=15 // pred_fallthru
        _
      // Predicated region
      $region25: #{tpu_custom_call.1} parent=15 // pred_check
        %p175 = pneg %p82
      $region26: #{tpu_custom_call.1} parent=15 // pred_check_branch
        %177 = sbr.rel (%p175) target = $region28
      $region27: #{tpu_custom_call.1} parent=15 // pred_region
        %p178 = scmp.lt.s32.totalorder %s10, 3
        %s179 = scalar_select %p178, %s10, 3
        %s180 = smul.addr %s179, 3
        %s181 = smul.addr %s180, 8
        %s182 = scalar_lea.vmem %s2, %s181
      $region28: #{tpu_custom_call.1} parent=15 // pred_fallthru
        _
      // Predicated region
      $region29: #{tpu_custom_call.1} parent=15 // pred_check
        %p183 = pneg %p108
      $region30: #{tpu_custom_call.1} parent=15 // pred_check_branch
        %185 = sbr.rel (%p183) target = $region32
      $region31: #{tpu_custom_call.1} parent=15 // pred_region
        %p186 = scmp.lt.s32.totalorder %s10, 3
        %s187 = scalar_select %p186, %s10, 3
        %s188 = smul.addr %s187, 24
        %s189 = smul.addr %s188, 8
        %s190 = scalar_lea.vmem %s3, %s189
      $region32: #{tpu_custom_call.1} parent=15 // pred_fallthru
        _
    $region16: #{tpu_custom_call.1} parent=5 // pred_fallthru
      _
    %p191 = scmp.le.s32.totalorder 1, %s10
    %p192 = scmp.lt.s32.totalorder %s10, 5
    %p193 = pnand %p191, %p192
    %p194 = pneg %p193
    // Predicated region
    $region33: #{tpu_custom_call.1} parent=5 // pred_check
      _
    $region34: #{tpu_custom_call.1} parent=5 // pred_check_branch
      %196 = sbr.rel (%p193) target = $region36
    $region35: #{tpu_custom_call.1} parent=5 // pred_region
      %s197 = ssub.s32 %s10, 1
      %p198 = scmp.lt.s32.totalorder %s15, 3
      %s199 = scalar_select %p198, %s15, 3
      %s200 = smul.addr %s199, 3
      %s201 = smul.addr %s200, 8
      %s202 = scalar_lea.vmem %s0, %s201
      %p203 = pneg %p36
      %p204 = pneg %p33
      %p205 = scmp.lt.s32.totalorder %s15, 3
      %s206 = scalar_select %p205, %s15, 3
      %s207 = smul.addr %s206, 24
      %s208 = smul.addr %s207, 8
      %s209 = scalar_lea.vmem %s1, %s208
      %p210 = pneg %p62
      %p211 = pneg %p59
      %p212 = scmp.lt.s32.totalorder %s15, 3
      %s213 = scalar_select %p212, %s15, 3
      %s214 = smul.addr %s213, 3
      %s215 = smul.addr %s214, 8
      %s216 = scalar_lea.vmem %s2, %s215
      %p217 = pneg %p88
      %p218 = pneg %p85
      %p219 = scmp.lt.s32.totalorder %s15, 3
      %s220 = scalar_select %p219, %s15, 3
      %s221 = smul.addr %s220, 24
      %s222 = smul.addr %s221, 8
      %s223 = scalar_lea.vmem %s3, %s222
      %p224 = pneg %p114
      %p225 = pneg %p111
      %p226 = pneg %p140
      %p227 = pneg %p137
      %p228 = scmp.lt.s32.totalorder %s15, 3
      %s229 = scalar_select %p228, %s15, 3
      %s230 = scalar_lea.vmem %s4, %s229
      %p231 = scmp.lt.s32.totalorder %s15, 3
      %s232 = scalar_select %p231, %s15, 3
      %s233 = smul.addr %s232, 3
      %s234 = smul.addr %s233, 8
      %s235 = scalar_lea.vmem %s0, %s234
      %p236 = scmp.lt.s32.totalorder %s15, 3
      %s237 = scalar_select %p236, %s15, 3
      %s238 = smul.addr %s237, 24
      %s239 = smul.addr %s238, 8
      %s240 = scalar_lea.vmem %s1, %s239
      %p241 = scmp.lt.s32.totalorder %s15, 3
      %s242 = scalar_select %p241, %s15, 3
      %s243 = smul.addr %s242, 3
      %s244 = smul.addr %s243, 8
      %s245 = scalar_lea.vmem %s2, %s244
      %p246 = scmp.lt.s32.totalorder %s15, 3
      %s247 = scalar_select %p246, %s15, 3
      %s248 = smul.addr %s247, 24
      %s249 = smul.addr %s248, 8
      %s250 = scalar_lea.vmem %s3, %s249
      %p251 = scmp.lt.s32.totalorder %s15, 3
      %s252 = scalar_select %p251, %s15, 3
      %s253 = scalar_lea.vmem %s4, %s252
      %v254 = vld [vmem:[%s235] sm:$0xff]
      %v255 = vld [vmem:[%s235 + $0x8] sm:$0xff]
      %v256 = vld [vmem:[%s235 + $0x10] sm:$0xff]
      %v257 = vld [vmem:[%s240] sm:$0x3f]
      %v258 = vld [vmem:[%s240 + $0x8] sm:$0x3f]
      %v259 = vld [vmem:[%s240 + $0x10] sm:$0x3f]
      %v260 = vld [vmem:[%s240 + $0x18] sm:$0x3f]
      %v261 = vld [vmem:[%s240 + $0x20] sm:$0x3f]
      %v262 = vld [vmem:[%s240 + $0x28] sm:$0x3f]
      %v263 = vld [vmem:[%s240 + $0x30] sm:$0x3f]
      %v264 = vld [vmem:[%s240 + $0x38] sm:$0x3f]
      %v265 = vld [vmem:[%s240 + $0x40] sm:$0x3f]
      %v266 = vld [vmem:[%s240 + $0x48] sm:$0x3f]
      %v267 = vld [vmem:[%s240 + $0x50] sm:$0x3f]
      %v268 = vld [vmem:[%s240 + $0x58] sm:$0x3f]
      %v269 = vld [vmem:[%s240 + $0x60] sm:$0x3f]
      %v270 = vld [vmem:[%s240 + $0x68] sm:$0x3f]
      %v271 = vld [vmem:[%s240 + $0x70] sm:$0x3f]
      %v272 = vld [vmem:[%s240 + $0x78] sm:$0x3f]
      %v273 = vld [vmem:[%s240 + $0x80] sm:$0x3f]
      %v274 = vld [vmem:[%s240 + $0x88] sm:$0x3f]
      %v275 = vld [vmem:[%s240 + $0x90] sm:$0x3f]
      %v276 = vld [vmem:[%s240 + $0x98] sm:$0x3f]
      %v277 = vld [vmem:[%s240 + $0xa0] sm:$0x3f]
      %v278 = vld [vmem:[%s240 + $0xa8] sm:$0x3f]
      %v279 = vld [vmem:[%s240 + $0xb0] sm:$0x3f]
      %v280 = vld [vmem:[%s240 + $0xb8] sm:$0x3f]
      %v281 = vld [vmem:[%s245] sm:$0xff]
      %v282 = vld [vmem:[%s245 + $0x8] sm:$0xff]
      %v283 = vld [vmem:[%s245 + $0x10] sm:$0xff]
      %vm284 = vcmp.ge.f32.partialorder %v281, 0.7
      %vm285 = vcmp.ge.f32.partialorder %v282, 0.7
      %vm286 = vcmp.ge.f32.partialorder %v283, 0.7
      %v287 = vsel %vm284, 1, 0
      %v288 = vsel %vm285, 1, 0
      %v289 = vsel %vm286, 1, 0
      %v290 = vcvt.s32.f32 %v287
      %v291 = vcvt.s32.f32 %v288
      %v292 = vcvt.s32.f32 %v289
      %v293 = vmul.f32 %v254, %v290
      %v294 = vmul.f32 %v255, %v291
      %v295 = vmul.f32 %v256, %v292
      %v296 = vld [vmem:[%s250] sm:$0x3f]
      %v297 = vld [vmem:[%s250 + $0x8] sm:$0x3f]
      %v298 = vld [vmem:[%s250 + $0x10] sm:$0x3f]
      %v299 = vld [vmem:[%s250 + $0x18] sm:$0x3f]
      %v300 = vld [vmem:[%s250 + $0x20] sm:$0x3f]
      %v301 = vld [vmem:[%s250 + $0x28] sm:$0x3f]
      %v302 = vld [vmem:[%s250 + $0x30] sm:$0x3f]
      %v303 = vld [vmem:[%s250 + $0x38] sm:$0x3f]
      %v304 = vld [vmem:[%s250 + $0x40] sm:$0x3f]
      %v305 = vld [vmem:[%s250 + $0x48] sm:$0x3f]
      %v306 = vld [vmem:[%s250 + $0x50] sm:$0x3f]
      %v307 = vld [vmem:[%s250 + $0x58] sm:$0x3f]
      %v308 = vld [vmem:[%s250 + $0x60] sm:$0x3f]
      %v309 = vld [vmem:[%s250 + $0x68] sm:$0x3f]
      %v310 = vld [vmem:[%s250 + $0x70] sm:$0x3f]
      %v311 = vld [vmem:[%s250 + $0x78] sm:$0x3f]
      %v312 = vld [vmem:[%s250 + $0x80] sm:$0x3f]
      %v313 = vld [vmem:[%s250 + $0x88] sm:$0x3f]
      %v314 = vld [vmem:[%s250 + $0x90] sm:$0x3f]
      %v315 = vld [vmem:[%s250 + $0x98] sm:$0x3f]
      %v316 = vld [vmem:[%s250 + $0xa0] sm:$0x3f]
      %v317 = vld [vmem:[%s250 + $0xa8] sm:$0x3f]
      %v318 = vld [vmem:[%s250 + $0xb0] sm:$0x3f]
      %v319 = vld [vmem:[%s250 + $0xb8] sm:$0x3f]
      %vm320 = vcmp.ge.f32.partialorder %v296, 0.7
      %vm321 = vcmp.ge.f32.partialorder %v297, 0.7
      %vm322 = vcmp.ge.f32.partialorder %v298, 0.7
      %vm323 = vcmp.ge.f32.partialorder %v299, 0.7
      %vm324 = vcmp.ge.f32.partialorder %v300, 0.7
      %vm325 = vcmp.ge.f32.partialorder %v301, 0.7
      %vm326 = vcmp.ge.f32.partialorder %v302, 0.7
      %vm327 = vcmp.ge.f32.partialorder %v303, 0.7
      %vm328 = vcmp.ge.f32.partialorder %v304, 0.7
      %vm329 = vcmp.ge.f32.partialorder %v305, 0.7
      %vm330 = vcmp.ge.f32.partialorder %v306, 0.7
      %vm331 = vcmp.ge.f32.partialorder %v307, 0.7
      %vm332 = vcmp.ge.f32.partialorder %v308, 0.7
      %vm333 = vcmp.ge.f32.partialorder %v309, 0.7
      %vm334 = vcmp.ge.f32.partialorder %v310, 0.7
      %vm335 = vcmp.ge.f32.partialorder %v311, 0.7
      %vm336 = vcmp.ge.f32.partialorder %v312, 0.7
      %vm337 = vcmp.ge.f32.partialorder %v313, 0.7
      %vm338 = vcmp.ge.f32.partialorder %v314, 0.7
      %vm339 = vcmp.ge.f32.partialorder %v315, 0.7
      %vm340 = vcmp.ge.f32.partialorder %v316, 0.7
      %vm341 = vcmp.ge.f32.partialorder %v317, 0.7
      %vm342 = vcmp.ge.f32.partialorder %v318, 0.7
      %vm343 = vcmp.ge.f32.partialorder %v319, 0.7
      %v344 = vsel %vm320, 1, 0
      %v345 = vsel %vm321, 1, 0
      %v346 = vsel %vm322, 1, 0
      %v347 = vsel %vm323, 1, 0
      %v348 = vsel %vm324, 1, 0
      %v349 = vsel %vm325, 1, 0
      %v350 = vsel %vm326, 1, 0
      %v351 = vsel %vm327, 1, 0
      %v352 = vsel %vm328, 1, 0
      %v353 = vsel %vm329, 1, 0
      %v354 = vsel %vm330, 1, 0
      %v355 = vsel %vm331, 1, 0
      %v356 = vsel %vm332, 1, 0
      %v357 = vsel %vm333, 1, 0
      %v358 = vsel %vm334, 1, 0
      %v359 = vsel %vm335, 1, 0
      %v360 = vsel %vm336, 1, 0
      %v361 = vsel %vm337, 1, 0
      %v362 = vsel %vm338, 1, 0
      %v363 = vsel %vm339, 1, 0
      %v364 = vsel %vm340, 1, 0
      %v365 = vsel %vm341, 1, 0
      %v366 = vsel %vm342, 1, 0
      %v367 = vsel %vm343, 1, 0
      %v368 = vcvt.s32.f32 %v344
      %v369 = vcvt.s32.f32 %v345
      %v370 = vcvt.s32.f32 %v346
      %v371 = vcvt.s32.f32 %v347
      %v372 = vcvt.s32.f32 %v348
      %v373 = vcvt.s32.f32 %v349
      %v374 = vcvt.s32.f32 %v350
      %v375 = vcvt.s32.f32 %v351
      %v376 = vcvt.s32.f32 %v352
      %v377 = vcvt.s32.f32 %v353
      %v378 = vcvt.s32.f32 %v354
      %v379 = vcvt.s32.f32 %v355
      %v380 = vcvt.s32.f32 %v356
      %v381 = vcvt.s32.f32 %v357
      %v382 = vcvt.s32.f32 %v358
      %v383 = vcvt.s32.f32 %v359
      %v384 = vcvt.s32.f32 %v360
      %v385 = vcvt.s32.f32 %v361
      %v386 = vcvt.s32.f32 %v362
      %v387 = vcvt.s32.f32 %v363
      %v388 = vcvt.s32.f32 %v364
      %v389 = vcvt.s32.f32 %v365
      %v390 = vcvt.s32.f32 %v366
      %v391 = vcvt.s32.f32 %v367
      %v392 = vmul.f32 %v257, %v368
      %v393 = vmul.f32 %v258, %v369
      %v394 = vmul.f32 %v259, %v370
      %v395 = vmul.f32 %v260, %v371
      %v396 = vmul.f32 %v261, %v372
      %v397 = vmul.f32 %v262, %v373
      %v398 = vmul.f32 %v263, %v374
      %v399 = vmul.f32 %v264, %v375
      %v400 = vmul.f32 %v265, %v376
      %v401 = vmul.f32 %v266, %v377
      %v402 = vmul.f32 %v267, %v378
      %v403 = vmul.f32 %v268, %v379
      %v404 = vmul.f32 %v269, %v380
      %v405 = vmul.f32 %v270, %v381
      %v406 = vmul.f32 %v271, %v382
      %v407 = vmul.f32 %v272, %v383
      %v408 = vmul.f32 %v273, %v384
      %v409 = vmul.f32 %v274, %v385
      %v410 = vmul.f32 %v275, %v386
      %v411 = vmul.f32 %v276, %v387
      %v412 = vmul.f32 %v277, %v388
      %v413 = vmul.f32 %v278, %v389
      %v414 = vmul.f32 %v279, %v390
      %v415 = vmul.f32 %v280, %v391
      %v419 = vcombine.low %v293, %v294
      %v420 = vcombine.high %v293, %v294
      %v421 = vcombine.high %v295, %v295
      %v423 = vunpack.c.l.s4 1966171168
      %v424 = vunpack.c.0.s8 %v423
      %v425 = vlaneseq
      %v426 = vshrl.u32 %v425, 7
      %v427 = vsub.s32 %v424, %v426
      %v428 = vrot.slane %v419, %v427
      %v430 = vunpack.c.l.s4 1966171168
      %v431 = vunpack.c.0.s8 %v430
      %v432 = vlaneseq
      %v433 = vshrl.u32 %v432, 7
      %v434 = vsub.s32 %v431, %v433
      %v435 = vrot.slane %v420, %v434
      %v437 = vunpack.c.l.s4 1966171168
      %v438 = vunpack.c.0.s8 %v437
      %v439 = vlaneseq
      %v440 = vshrl.u32 %v439, 7
      %v441 = vsub.s32 %v438, %v440
      %v442 = vrot.slane %v295, %v441
      %v444 = vunpack.c.l.s4 1966171168
      %v445 = vunpack.c.0.s8 %v444
      %v446 = vlaneseq
      %v447 = vshrl.u32 %v446, 7
      %v448 = vsub.s32 %v445, %v447
      %v449 = vrot.slane %v421, %v448
      %v450 = vcombine.low %v428, %v442
      %v451 = vcombine.high %v428, %v442
      %v452 = vcombine.low %v435, %v449
      %v453 = vcombine.high %v435, %v449
      %v455 = vunpack.c.l.s4 1966171168
      %v456 = vunpack.c.0.s8 %v455
      %v457 = vlaneseq
      %v458 = vshrl.u32 %v457, 7
      %v459 = vsub.s32 %v456, %v458
      %v460 = vrot.slane %v450, %v459
      %v462 = vunpack.c.l.s4 1966171168
      %v463 = vunpack.c.0.s8 %v462
      %v464 = vlaneseq
      %v465 = vshrl.u32 %v464, 7
      %v466 = vsub.s32 %v463, %v465
      %v467 = vrot.slane %v452, %v466
      %v469 = vunpack.c.l.s4 1966171168
      %v470 = vunpack.c.0.s8 %v469
      %v471 = vlaneseq
      %v472 = vshrl.u32 %v471, 7
      %v473 = vsub.s32 %v470, %v472
      %v474 = vrot.slane %v451, %v473
      %v476 = vunpack.c.l.s4 1966171168
      %v477 = vunpack.c.0.s8 %v476
      %v478 = vlaneseq
      %v479 = vshrl.u32 %v478, 7
      %v480 = vsub.s32 %v477, %v479
      %v481 = vrot.slane %v453, %v480
      %v482 = vcombine.high %v460, %v460
      %v483 = vcombine.high %v467, %v467
      %v484 = vcombine.high %v474, %v474
      %v485 = vcombine.high %v481, %v481
      %v486 = vlaneseq
      %v487 = vshrl.u32 %v486, 7
      %v488 = vsub.s32 0, %v487
      %v489 = vrot.slane %v460, %v488
      %v490 = vlaneseq
      %v491 = vshrl.u32 %v490, 7
      %v492 = vsub.s32 1, %v491
      %v493 = vrot.slane %v460, %v492
      %v494 = vlaneseq
      %v495 = vshrl.u32 %v494, 7
      %v496 = vsub.s32 2, %v495
      %v497 = vrot.slane %v460, %v496
      %v498 = vlaneseq
      %v499 = vshrl.u32 %v498, 7
      %v500 = vsub.s32 0, %v499
      %v501 = vrot.slane %v474, %v500
      %v502 = vlaneseq
      %v503 = vshrl.u32 %v502, 7
      %v504 = vsub.s32 1, %v503
      %v505 = vrot.slane %v474, %v504
      %v506 = vlaneseq
      %v507 = vshrl.u32 %v506, 7
      %v508 = vsub.s32 2, %v507
      %v509 = vrot.slane %v474, %v508
      %v510 = vlaneseq
      %v511 = vshrl.u32 %v510, 7
      %v512 = vsub.s32 0, %v511
      %v513 = vrot.slane %v482, %v512
      %v514 = vlaneseq
      %v515 = vshrl.u32 %v514, 7
      %v516 = vsub.s32 1, %v515
      %v517 = vrot.slane %v482, %v516
      %v518 = vlaneseq
      %v519 = vshrl.u32 %v518, 7
      %v520 = vsub.s32 2, %v519
      %v521 = vrot.slane %v482, %v520
      %v522 = vlaneseq
      %v523 = vshrl.u32 %v522, 7
      %v524 = vsub.s32 0, %v523
      %v525 = vrot.slane %v484, %v524
      %v526 = vlaneseq
      %v527 = vshrl.u32 %v526, 7
      %v528 = vsub.s32 1, %v527
      %v529 = vrot.slane %v484, %v528
      %v530 = vlaneseq
      %v531 = vshrl.u32 %v530, 7
      %v532 = vsub.s32 2, %v531
      %v533 = vrot.slane %v484, %v532
      %v534 = vlaneseq
      %v535 = vshrl.u32 %v534, 7
      %v536 = vsub.s32 0, %v535
      %v537 = vrot.slane %v467, %v536
      %v538 = vlaneseq
      %v539 = vshrl.u32 %v538, 7
      %v540 = vsub.s32 1, %v539
      %v541 = vrot.slane %v467, %v540
      %v542 = vlaneseq
      %v543 = vshrl.u32 %v542, 7
      %v544 = vsub.s32 2, %v543
      %v545 = vrot.slane %v467, %v544
      %v546 = vlaneseq
      %v547 = vshrl.u32 %v546, 7
      %v548 = vsub.s32 0, %v547
      %v549 = vrot.slane %v481, %v548
      %v550 = vlaneseq
      %v551 = vshrl.u32 %v550, 7
      %v552 = vsub.s32 1, %v551
      %v553 = vrot.slane %v481, %v552
      %v554 = vlaneseq
      %v555 = vshrl.u32 %v554, 7
      %v556 = vsub.s32 2, %v555
      %v557 = vrot.slane %v481, %v556
      %v558 = vlaneseq
      %v559 = vshrl.u32 %v558, 7
      %v560 = vsub.s32 0, %v559
      %v561 = vrot.slane %v483, %v560
      %v562 = vlaneseq
      %v563 = vshrl.u32 %v562, 7
      %v564 = vsub.s32 1, %v563
      %v565 = vrot.slane %v483, %v564
      %v566 = vlaneseq
      %v567 = vshrl.u32 %v566, 7
      %v568 = vsub.s32 2, %v567
      %v569 = vrot.slane %v483, %v568
      %v570 = vlaneseq
      %v571 = vshrl.u32 %v570, 7
      %v572 = vsub.s32 0, %v571
      %v573 = vrot.slane %v485, %v572
      %v574 = vlaneseq
      %v575 = vshrl.u32 %v574, 7
      %v576 = vsub.s32 1, %v575
      %v577 = vrot.slane %v485, %v576
      %v578 = vlaneseq
      %v579 = vshrl.u32 %v578, 7
      %v580 = vsub.s32 2, %v579
      %v581 = vrot.slane %v485, %v580
      %v606 = vmul.f32 %v392, %v489
      %v607 = vmul.f32 %v393, %v493
      %v608 = vmul.f32 %v394, %v497
      %v609 = vmul.f32 %v395, %v501
      %v610 = vmul.f32 %v396, %v505
      %v611 = vmul.f32 %v397, %v509
      %v612 = vmul.f32 %v398, %v513
      %v613 = vmul.f32 %v399, %v517
      %v614 = vmul.f32 %v400, %v521
      %v615 = vmul.f32 %v401, %v525
      %v616 = vmul.f32 %v402, %v529
      %v617 = vmul.f32 %v403, %v533
      %v618 = vmul.f32 %v404, %v537
      %v619 = vmul.f32 %v405, %v541
      %v620 = vmul.f32 %v406, %v545
      %v621 = vmul.f32 %v407, %v549
      %v622 = vmul.f32 %v408, %v553
      %v623 = vmul.f32 %v409, %v557
      %v624 = vmul.f32 %v410, %v561
      %v625 = vmul.f32 %v411, %v565
      %v626 = vmul.f32 %v412, %v569
      %v627 = vmul.f32 %v413, %v573
      %v628 = vmul.f32 %v414, %v577
      %v629 = vmul.f32 %v415, %v581
      %vm630 = vcmask 1045504
      %v631 = vsel %vm630, %v606, 0.0
      %v632 = vsel %vm630, %v607, 0.0
      %v633 = vadd.f32 %v631, %v632
      %vm634 = vcmask 357376
      %v635 = vsel %vm634, %v608, 0.0
      %v636 = vadd.f32 %v633, %v635
      %637 = vadd.xlane.f32.xlu0 %v636
      %v638 = vpop.xlane.xlu0 %637
      %v639 = vsel %vm630, %v609, 0.0
      %v640 = vsel %vm630, %v610, 0.0
      %v641 = vadd.f32 %v639, %v640
      %v642 = vsel %vm634, %v611, 0.0
      %v643 = vadd.f32 %v641, %v642
      %644 = vadd.xlane.f32.xlu0 %v643
      %v645 = vpop.xlane.xlu0 %644
      %v646 = vsel %vm630, %v612, 0.0
      %v647 = vsel %vm630, %v613, 0.0
      %v648 = vadd.f32 %v646, %v647
      %v649 = vsel %vm634, %v614, 0.0
      %v650 = vadd.f32 %v648, %v649
      %651 = vadd.xlane.f32.xlu0 %v650
      %v652 = vpop.xlane.xlu0 %651
      %v653 = vsel %vm630, %v615, 0.0
      %v654 = vsel %vm630, %v616, 0.0
      %v655 = vadd.f32 %v653, %v654
      %v656 = vsel %vm634, %v617, 0.0
      %v657 = vadd.f32 %v655, %v656
      %658 = vadd.xlane.f32.xlu0 %v657
      %v659 = vpop.xlane.xlu0 %658
      %v660 = vsel %vm630, %v618, 0.0
      %v661 = vsel %vm630, %v619, 0.0
      %v662 = vadd.f32 %v660, %v661
      %v663 = vsel %vm634, %v620, 0.0
      %v664 = vadd.f32 %v662, %v663
      %665 = vadd.xlane.f32.xlu0 %v664
      %v666 = vpop.xlane.xlu0 %665
      %v667 = vsel %vm630, %v621, 0.0
      %v668 = vsel %vm630, %v622, 0.0
      %v669 = vadd.f32 %v667, %v668
      %v670 = vsel %vm634, %v623, 0.0
      %v671 = vadd.f32 %v669, %v670
      %672 = vadd.xlane.f32.xlu0 %v671
      %v673 = vpop.xlane.xlu0 %672
      %v674 = vsel %vm630, %v624, 0.0
      %v675 = vsel %vm630, %v625, 0.0
      %v676 = vadd.f32 %v674, %v675
      %v677 = vsel %vm634, %v626, 0.0
      %v678 = vadd.f32 %v676, %v677
      %679 = vadd.xlane.f32.xlu0 %v678
      %v680 = vpop.xlane.xlu0 %679
      %v681 = vsel %vm630, %v627, 0.0
      %v682 = vsel %vm630, %v628, 0.0
      %v683 = vadd.f32 %v681, %v682
      %v684 = vsel %vm634, %v629, 0.0
      %v685 = vadd.f32 %v683, %v684
      %686 = vadd.xlane.f32.xlu0 %v685
      %v687 = vpop.xlane.xlu0 %686
      %v688 = vmul.f32 %v638, 11.111111
      %v689 = vmul.f32 %v645, 11.111111
      %v690 = vmul.f32 %v652, 11.111111
      %v691 = vmul.f32 %v659, 11.111111
      %v692 = vmul.f32 %v666, 11.111111
      %v693 = vmul.f32 %v673, 11.111111
      %v694 = vmul.f32 %v680, 11.111111
      %v695 = vmul.f32 %v687, 11.111111
      %v704 = vlaneseq
      %v705 = vand.u32 %v704, 127
      %v706 = vlaneseq
      %v707 = vshrl.u32 %v706, 7
      %v708 = vsub.s32 %v705, %v707
      %v709 = vrot.slane %v688, %v708
      %v710 = vlaneseq
      %v711 = vshrl.u32 %v710, 7
      %v712 = vsub.s32 %v705, %v711
      %v713 = vrot.slane %v689, %v712
      %v714 = vlaneseq
      %v715 = vshrl.u32 %v714, 7
      %v716 = vsub.s32 %v705, %v715
      %v717 = vrot.slane %v690, %v716
      %v718 = vlaneseq
      %v719 = vshrl.u32 %v718, 7
      %v720 = vsub.s32 %v705, %v719
      %v721 = vrot.slane %v691, %v720
      %v722 = vlaneseq
      %v723 = vshrl.u32 %v722, 7
      %v724 = vsub.s32 %v705, %v723
      %v725 = vrot.slane %v692, %v724
      %v726 = vlaneseq
      %v727 = vshrl.u32 %v726, 7
      %v728 = vsub.s32 %v705, %v727
      %v729 = vrot.slane %v693, %v728
      %v730 = vlaneseq
      %v731 = vshrl.u32 %v730, 7
      %v732 = vsub.s32 %v705, %v731
      %v733 = vrot.slane %v694, %v732
      %v734 = vlaneseq
      %v735 = vshrl.u32 %v734, 7
      %v736 = vsub.s32 %v705, %v735
      %v737 = vrot.slane %v695, %v736
      %vm738 = vcmask 1041409
      %v739 = vsel %vm738, %v713, %v709
      %vm740 = vcmask 1042434
      %v741 = vsel %vm740, %v717, %v739
      %vm742 = vcmask 1043459
      %v743 = vsel %vm742, %v721, %v741
      %vm744 = vcmask 1044484
      %v745 = vsel %vm744, %v725, %v743
      %vm746 = vcmask 1045509
      %v747 = vsel %vm746, %v729, %v745
      %vm748 = vcmask 1046534
      %v749 = vsel %vm748, %v733, %v747
      %vm750 = vcmask 1047559
      %v751 = vsel %vm750, %v737, %v749
      %vm753 = vcmask 48128
      %v754 = vsel %vm753, %v751, -inf
      %755 = vmax.xlane.f32.xlu0 %v754
      %v756 = vpop.xlane.xlu0 %755
      %v758 = vlaneseq
      %v759 = vshrl.u32 %v758, 7
      %v760 = vsub.s32 0, %v759
      %v761 = vrot.slane %v756, %v760
      %v762 = vlaneseq
      %v763 = vshrl.u32 %v762, 7
      %v764 = vsub.s32 1, %v763
      %v765 = vrot.slane %v756, %v764
      %v766 = vlaneseq
      %v767 = vshrl.u32 %v766, 7
      %v768 = vsub.s32 2, %v767
      %v769 = vrot.slane %v756, %v768
      %v770 = vlaneseq
      %v771 = vshrl.u32 %v770, 7
      %v772 = vsub.s32 3, %v771
      %v773 = vrot.slane %v756, %v772
      %v774 = vlaneseq
      %v775 = vshrl.u32 %v774, 7
      %v776 = vsub.s32 4, %v775
      %v777 = vrot.slane %v756, %v776
      %v778 = vlaneseq
      %v779 = vshrl.u32 %v778, 7
      %v780 = vsub.s32 5, %v779
      %v781 = vrot.slane %v756, %v780
      %v782 = vlaneseq
      %v783 = vshrl.u32 %v782, 7
      %v784 = vsub.s32 6, %v783
      %v785 = vrot.slane %v756, %v784
      %v786 = vlaneseq
      %v787 = vshrl.u32 %v786, 7
      %v788 = vsub.s32 7, %v787
      %v789 = vrot.slane %v756, %v788
      %v798 = vsub.f32 %v688, %v761
      %v799 = vsub.f32 %v689, %v765
      %v800 = vsub.f32 %v690, %v769
      %v801 = vsub.f32 %v691, %v773
      %v802 = vsub.f32 %v692, %v777
      %v803 = vsub.f32 %v693, %v781
      %v804 = vsub.f32 %v694, %v785
      %v805 = vsub.f32 %v695, %v789
      %v806 = vmul.f32 %v798, 1.442695
      %v807 = vpow.pop %v806
      %v808 = vmul.f32 %v799, 1.442695
      %v809 = vpow.pop %v808
      %v810 = vmul.f32 %v800, 1.442695
      %v811 = vpow.pop %v810
      %v812 = vmul.f32 %v801, 1.442695
      %v813 = vpow.pop %v812
      %v814 = vmul.f32 %v802, 1.442695
      %v815 = vpow.pop %v814
      %v816 = vmul.f32 %v803, 1.442695
      %v817 = vpow.pop %v816
      %v818 = vmul.f32 %v804, 1.442695
      %v819 = vpow.pop %v818
      %v820 = vmul.f32 %v805, 1.442695
      %v821 = vpow.pop %v820
      %830 = vset.pattern.permute.xlu0 0
      %831 = vperm.xlu0 %830, %v807
      %v832 = vpop.permute.xlu0 %831
      %833 = vset.pattern.permute.xlu0 0
      %834 = vperm.xlu0 %833, %v809
      %v835 = vpop.permute.xlu0 %834
      %836 = vset.pattern.permute.xlu0 0
      %837 = vperm.xlu0 %836, %v811
      %v838 = vpop.permute.xlu0 %837
      %839 = vset.pattern.permute.xlu0 0
      %840 = vperm.xlu0 %839, %v813
      %v841 = vpop.permute.xlu0 %840
      %842 = vset.pattern.permute.xlu0 0
      %843 = vperm.xlu0 %842, %v815
      %v844 = vpop.permute.xlu0 %843
      %845 = vset.pattern.permute.xlu0 0
      %846 = vperm.xlu0 %845, %v817
      %v847 = vpop.permute.xlu0 %846
      %848 = vset.pattern.permute.xlu0 0
      %849 = vperm.xlu0 %848, %v819
      %v850 = vpop.permute.xlu0 %849
      %851 = vset.pattern.permute.xlu0 0
      %852 = vperm.xlu0 %851, %v821
      %v853 = vpop.permute.xlu0 %852
      %v854 = vlaneseq
      %v855 = vshrl.u32 %v854, 7
      %v856 = vsub.s32 %v705, %v855
      %v857 = vrot.slane %v832, %v856
      %v858 = vlaneseq
      %v859 = vshrl.u32 %v858, 7
      %v860 = vsub.s32 %v705, %v859
      %v861 = vrot.slane %v835, %v860
      %v862 = vlaneseq
      %v863 = vshrl.u32 %v862, 7
      %v864 = vsub.s32 %v705, %v863
      %v865 = vrot.slane %v838, %v864
      %v866 = vlaneseq
      %v867 = vshrl.u32 %v866, 7
      %v868 = vsub.s32 %v705, %v867
      %v869 = vrot.slane %v841, %v868
      %v870 = vlaneseq
      %v871 = vshrl.u32 %v870, 7
      %v872 = vsub.s32 %v705, %v871
      %v873 = vrot.slane %v844, %v872
      %v874 = vlaneseq
      %v875 = vshrl.u32 %v874, 7
      %v876 = vsub.s32 %v705, %v875
      %v877 = vrot.slane %v847, %v876
      %v878 = vlaneseq
      %v879 = vshrl.u32 %v878, 7
      %v880 = vsub.s32 %v705, %v879
      %v881 = vrot.slane %v850, %v880
      %v882 = vlaneseq
      %v883 = vshrl.u32 %v882, 7
      %v884 = vsub.s32 %v705, %v883
      %v885 = vrot.slane %v853, %v884
      %v886 = vsel %vm738, %v861, %v857
      %v887 = vsel %vm740, %v865, %v886
      %v888 = vsel %vm742, %v869, %v887
      %v889 = vsel %vm744, %v873, %v888
      %v890 = vsel %vm746, %v877, %v889
      %v891 = vsel %vm748, %v881, %v890
      %v892 = vsel %vm750, %v885, %v891
      %v894 = vsel %vm753, %v892, 0.0
      %895 = vadd.xlane.f32.xlu0 %v894
      %v896 = vpop.xlane.xlu0 %895
      %v897 = vlog2.pop %v896
      %v898 = vmul.f32 %v897, 0.6931472
      %v899 = vadd.f32 %v756, %v898
      %v900 = vrot.slane %v689, 7
      %v901 = vsel %vm738, %v900, %v688
      %v902 = vrot.slane %v690, 6
      %v903 = vsel %vm740, %v902, %v901
      %v904 = vrot.slane %v691, 5
      %v905 = vsel %vm742, %v904, %v903
      %v906 = vrot.slane %v692, 4
      %v907 = vsel %vm744, %v906, %v905
      %v908 = vrot.slane %v693, 3
      %v909 = vsel %vm746, %v908, %v907
      %v910 = vrot.slane %v694, 2
      %v911 = vsel %vm748, %v910, %v909
      %v912 = vrot.slane %v695, 1
      %v913 = vsel %vm750, %v912, %v911
      %v915 = vsub.f32 %v899, %v913
      %vm916 = vcmask 7168
      %v917 = vsel %vm916, %v915, 0.0
      %918 = vadd.xlane.f32.xlu0 %v917
      %v919 = vpop.xlane.xlu0 %918
      %v920 = vrot.slane %v919, 4
      %v921 = vadd.f32 %v919, %v920
      %v922 = vrot.slane %v921, 2
      %v923 = vadd.f32 %v921, %v922
      %v924 = vrot.slane %v923, 1
      %v925 = vadd.f32 %v923, %v924
      %s926 = vtos %v925
      %s927 = smul.f32 %s926, 0.125
      %v928 = vstv %s927
      %vm929 = vcmask 0
      %930 = vst.msk [vmem:[%s253] sm:$0x1] %vm929, %v928
      %p931 = scmp.lt.s32.totalorder %s15, 3
      %s932 = scalar_select %p931, %s15, 3
      %s933 = scalar_lea.vmem %s4, %s932
      // Predicated region
      $region37: #{tpu_custom_call.1} parent=35 // pred_check
        %p934 = pneg %p137
      $region38: #{tpu_custom_call.1} parent=35 // pred_check_branch
        %936 = sbr.rel (%p934) target = $region40
      $region39: #{tpu_custom_call.1} parent=35 // pred_region
        _
      $region40: #{tpu_custom_call.1} parent=35 // pred_fallthru
        _
    $region36: #{tpu_custom_call.1} parent=5 // pred_fallthru
      _
    %p937 = scmp.le.s32.totalorder 2, %s10
    // Predicated region
    $region41: #{tpu_custom_call.1} parent=5 // pred_check
      %p938 = pneg %p937
    $region42: #{tpu_custom_call.1} parent=5 // pred_check_branch
      %940 = sbr.rel (%p938) target = $region44
    $region43: #{tpu_custom_call.1} parent=5 // pred_region
      %s941 = ssub.s32 %s10, 2
      // Predicated region
      $region45: #{tpu_custom_call.1} parent=43 // pred_check
        %p942 = pneg %p143
      $region46: #{tpu_custom_call.1} parent=43 // pred_check_branch
        %944 = sbr.rel (%p942) target = $region48
      $region47: #{tpu_custom_call.1} parent=43 // pred_region
        %p945 = scmp.lt.s32.totalorder %s16, 3
        %s946 = scalar_select %p945, %s16, 3
        %s947 = scalar_lea.vmem %s4, %s946
      $region48: #{tpu_custom_call.1} parent=43 // pred_fallthru
        _
    $region44: #{tpu_custom_call.1} parent=5 // pred_fallthru
      _
  $region6: #{tpu_custom_call.1} parent=0 // loop_footer
    %s14 = sadd.s32 1, %s10
  $region7: #{tpu_custom_call.1} parent=0 // loop_footer_branch
    %9 = sbr.rel target = $region3
  $region8: #{tpu_custom_call.1} parent=0 // loop_exit
    _

</llo_original>
